<compile_context>
chip_gen: v7x
topology: tpu7x:2x2x1
jax: 0.10.0
libtpu: 0.0.40
codegen_flags: <defaults>
</compile_context>

<pallas_src>
import functools
import numpy as np

import jax
import jax.numpy as jnp
from jax.experimental import pallas as pl
from jax.experimental.pallas import tpu as pltpu


# ----------------------------------------------------------------------------
# Fused (linear 4C->2C) + LayerNorm(2C) Pallas kernel
# ----------------------------------------------------------------------------
def _merge_linear_ln_kernel(x_ref, w_ref, b_ref, g_ref, beta_ref, o_ref, *, eps):
    # x_ref:    (tm, 4C)   row tile of concatenated 2x2 patches
    # w_ref:    (4C, 2C)   linear weight (already transposed for x @ W)
    # b_ref:    (1, 2C)    linear bias
    # g_ref:    (1, 2C)    LayerNorm gamma
    # beta_ref: (1, 2C)    LayerNorm beta
    acc = jnp.dot(x_ref[...], w_ref[...], preferred_element_type=jnp.float32)
    acc = acc + b_ref[...]
    # Fused LayerNorm over the feature (lane) axis.
    mu = jnp.mean(acc, axis=-1, keepdims=True)
    d = acc - mu
    var = jnp.mean(d * d, axis=-1, keepdims=True)
    o_ref[...] = (d * jax.lax.rsqrt(var + eps) * g_ref[...] + beta_ref[...]).astype(
        o_ref.dtype
    )


def _choose_row_tile(M):
    # Largest multiple-of-8 tile <= 512 that divides M, preferring >=2 grid steps
    # (so v7x megacore gets work on both TensorCores and the pipeline overlaps DMA).
    candidates = [t for t in (512, 384, 256, 128, 64, 32, 16, 8) if M % t == 0]
    for t in candidates:
        if M // t >= 2:
            return t
    if candidates:
        return candidates[0]
    return M  # fall back to a single full-M block (legal: block dim == full array dim)


@functools.lru_cache(maxsize=None)
def _build_merge_call(M, K, Nout, tm, eps):
    grid = (M // tm,)
    return pl.pallas_call(
        functools.partial(_merge_linear_ln_kernel, eps=eps),
        out_shape=jax.ShapeDtypeStruct((M, Nout), jnp.float32),
        grid_spec=pltpu.PrefetchScalarGridSpec(
            num_scalar_prefetch=0,
            grid=grid,
            in_specs=[
                pl.BlockSpec((tm, K), lambda i: (i, 0)),      # row tile of x
                pl.BlockSpec((K, Nout), lambda i: (0, 0)),    # full weight, resident
                pl.BlockSpec((1, Nout), lambda i: (0, 0)),    # bias
                pl.BlockSpec((1, Nout), lambda i: (0, 0)),    # gamma
                pl.BlockSpec((1, Nout), lambda i: (0, 0)),    # beta
            ],
            out_specs=pl.BlockSpec((tm, Nout), lambda i: (i, 0)),
        ),
        compiler_params=pltpu.CompilerParams(
            dimension_semantics=("parallel",),
        ),
    )


def _fused_merge(cat2d, w, b, gamma, beta, eps=1e-5):
    M, K = cat2d.shape
    Nout = w.shape[1]
    tm = _choose_row_tile(M)
    call = _build_merge_call(M, K, Nout, tm, float(eps))
    return call(
        cat2d,
        w,
        b.reshape(1, Nout),
        gamma.reshape(1, Nout),
        beta.reshape(1, Nout),
    )


# ----------------------------------------------------------------------------
# Whole-module forward (single jit; glue reshapes fused by XLA, one Pallas call)
# ----------------------------------------------------------------------------
@jax.jit
def patch_merging_forward(x, w, b, gamma, beta):
    """
    x: (N, H*W, C)  ->  (N, (H/2)*(W/2), 2C)
    Matches PatchMergingBlock.forward: concat([TL, BL, TR, BR], -1) -> Linear -> LayerNorm.
    """
    N, T, C = x.shape
    H = W = int(np.sqrt(T))
    # 2x2 neighbor gather. torch concat order [TL, BL, TR, BR] == group index k = dw*2 + dh.
    x6 = x.reshape(N, H // 2, 2, W // 2, 2, C)          # (n, i, dh, j, dw, c)
    cat = x6.transpose(0, 1, 3, 4, 2, 5)                # (n, i, j, dw, dh, c)
    cat = cat.reshape(N * (H // 2) * (W // 2), 4 * C)   # (M, 4C)
    y = _fused_merge(cat, w, b, gamma, beta)            # (M, 2C) fused linear+LN
    return y.reshape(N, (H // 2) * (W // 2), 2 * C)


# ----------------------------------------------------------------------------
# Deterministic parameter init (mirrors nn.Linear / nn.LayerNorm shapes & defaults)
# ----------------------------------------------------------------------------
def init_patch_merging(key, embed_dim=96):
    k1, k2 = jax.random.split(key)
    fan_in = 4 * embed_dim
    fan_out = 2 * embed_dim
    bound = 1.0 / np.sqrt(fan_in)
    # Stored transposed (fan_in, fan_out) so the kernel computes x @ W directly.
    w = jax.random.uniform(k1, (fan_in, fan_out), jnp.float32, -bound, bound)
    b = jax.random.uniform(k2, (fan_out,), jnp.float32, -bound, bound)
    gamma = jnp.ones((fan_out,), jnp.float32)
    beta = jnp.zeros((fan_out,), jnp.float32)
    return w, b, gamma, beta


# ----------------------------------------------------------------------------
# Pure-JAX reference (mirrors the PyTorch forward exactly) for a correctness check
# ----------------------------------------------------------------------------
def _reference_forward(x, w, b, gamma, beta, eps=1e-5):
    N, T, C = x.shape
    H = W = int(np.sqrt(T))
    x4 = x.reshape(N, H, W, C)
    cat = jnp.concatenate(
        [x4[:, 0::2, 0::2, :], x4[:, 1::2, 0::2, :],
         x4[:, 0::2, 1::2, :], x4[:, 1::2, 1::2, :]], axis=-1)
    cat = cat.reshape(N, -1, 4 * C)
    y = cat @ w + b
    mu = jnp.mean(y, axis=-1, keepdims=True)
    var = jnp.mean((y - mu) ** 2, axis=-1, keepdims=True)
    return (y - mu) * jax.lax.rsqrt(var + eps) * gamma + beta


# ----------------------------------------------------------------------------
if __name__ == "__main__":
    embed_dim = 96
    N, H, W = 2, 16, 16                       # small shapes consistent with the module
    key = jax.random.PRNGKey(0)
    kx, kp = jax.random.split(key)
    x = jax.random.normal(kx, (N, H * W, embed_dim), jnp.float32)
    w, b, gamma, beta = init_patch_merging(kp, embed_dim)

    out = patch_merging_forward(x, w, b, gamma, beta)
    out = jax.block_until_ready(out)

    assert out.shape == (N, (H // 2) * (W // 2), 2 * embed_dim), out.shape
    assert bool(jnp.all(jnp.isfinite(out)))

    ref = _reference_forward(x, w, b, gamma, beta)
    np.testing.assert_allclose(np.asarray(out), np.asarray(ref), rtol=1e-5, atol=1e-5)

    print("KERNEL_OK")
</pallas_src>

<mosaic_0001>
module attributes {stable_mosaic.version = 11 : i64} {
  func.func @_merge_linear_ln_kernel(%arg0: i32, %arg1: memref<64x384xf32, #tpu.memory_space<vmem>>, %arg2: memref<384x192xf32, #tpu.memory_space<vmem>>, %arg3: memref<1x192xf32, #tpu.memory_space<vmem>>, %arg4: memref<1x192xf32, #tpu.memory_space<vmem>>, %arg5: memref<1x192xf32, #tpu.memory_space<vmem>>, %arg6: memref<64x192xf32, #tpu.memory_space<vmem>>) attributes {dimension_semantics = [#tpu.dimension_semantics<parallel>], iteration_bounds = array<i64: 2>, scalar_prefetch = 0 : i64, scratch_operands = 0 : i64, tpu.core_type = #tpu.core_type<tc>, window_params = [{transform_indices = @transform_0, window_bounds = array<i64: 64, 384>}, {pipeline_mode = #tpu.pipeline_mode<synchronous>, transform_indices = @transform_1, window_bounds = array<i64: 384, 192>}, {pipeline_mode = #tpu.pipeline_mode<synchronous>, transform_indices = @transform_2, window_bounds = array<i64: 1, 192>}, {pipeline_mode = #tpu.pipeline_mode<synchronous>, transform_indices = @transform_3, window_bounds = array<i64: 1, 192>}, {pipeline_mode = #tpu.pipeline_mode<synchronous>, transform_indices = @transform_4, window_bounds = array<i64: 1, 192>}, {transform_indices = @transform_5, window_bounds = array<i64: 64, 192>}]} {
    %c0 = arith.constant 0 : index
    %c0_0 = arith.constant 0 : index
    %0 = vector.load %arg1[%c0, %c0_0] : memref<64x384xf32, #tpu.memory_space<vmem>>, vector<64x384xf32>
    %c0_1 = arith.constant 0 : index
    %c0_2 = arith.constant 0 : index
    %1 = vector.load %arg2[%c0_1, %c0_2] : memref<384x192xf32, #tpu.memory_space<vmem>>, vector<384x192xf32>
    %cst = arith.constant dense<0.000000e+00> : vector<64x192xf32>
    %2 = tpu.matmul %0, %1, %cst {dimension_numbers = #tpu.dot_dimension_numbers<[1], [0], [0], [1], [0, 0, 1, 1], [], []>} : vector<64x384xf32>, vector<384x192xf32>, vector<64x192xf32> -> vector<64x192xf32>
    %c0_3 = arith.constant 0 : index
    %c0_4 = arith.constant 0 : index
    %3 = vector.load %arg3[%c0_3, %c0_4] : memref<1x192xf32, #tpu.memory_space<vmem>>, vector<1x192xf32>
    %4 = vector.broadcast %3 : vector<1x192xf32> to vector<64x192xf32>
    %5 = arith.addf %2, %4 : vector<64x192xf32>
    %cst_5 = arith.constant dense<0.000000e+00> : vector<64xf32>
    %6 = vector.multi_reduction <add>, %5, %cst_5 [1] : vector<64x192xf32> to vector<64xf32>
    %7 = vector.shape_cast %6 : vector<64xf32> to vector<64x1xf32>
    %cst_6 = arith.constant 1.920000e+02 : f32
    %8 = vector.broadcast %cst_6 : f32 to vector<64x1xf32>
    %9 = arith.divf %7, %8 : vector<64x1xf32>
    %10 = vector.broadcast %9 : vector<64x1xf32> to vector<64x192xf32>
    %11 = arith.subf %5, %10 : vector<64x192xf32>
    %12 = arith.mulf %11, %11 : vector<64x192xf32>
    %cst_7 = arith.constant dense<0.000000e+00> : vector<64xf32>
    %13 = vector.multi_reduction <add>, %12, %cst_7 [1] : vector<64x192xf32> to vector<64xf32>
    %14 = vector.shape_cast %13 : vector<64xf32> to vector<64x1xf32>
    %cst_8 = arith.constant 1.920000e+02 : f32
    %15 = vector.broadcast %cst_8 : f32 to vector<64x1xf32>
    %16 = arith.divf %14, %15 : vector<64x1xf32>
    %cst_9 = arith.constant 9.99999974E-6 : f32
    %17 = vector.broadcast %cst_9 : f32 to vector<64x1xf32>
    %18 = arith.addf %16, %17 : vector<64x1xf32>
    %19 = math.rsqrt %18 : vector<64x1xf32>
    %20 = vector.broadcast %19 : vector<64x1xf32> to vector<64x192xf32>
    %21 = arith.mulf %11, %20 : vector<64x192xf32>
    %c0_10 = arith.constant 0 : index
    %c0_11 = arith.constant 0 : index
    %22 = vector.load %arg4[%c0_10, %c0_11] : memref<1x192xf32, #tpu.memory_space<vmem>>, vector<1x192xf32>
    %23 = vector.broadcast %22 : vector<1x192xf32> to vector<64x192xf32>
    %24 = arith.mulf %21, %23 : vector<64x192xf32>
    %c0_12 = arith.constant 0 : index
    %c0_13 = arith.constant 0 : index
    %25 = vector.load %arg5[%c0_12, %c0_13] : memref<1x192xf32, #tpu.memory_space<vmem>>, vector<1x192xf32>
    %26 = vector.broadcast %25 : vector<1x192xf32> to vector<64x192xf32>
    %27 = arith.addf %24, %26 : vector<64x192xf32>
    %c0_14 = arith.constant 0 : index
    %c0_15 = arith.constant 0 : index
    %28 = vector.load %arg6[%c0_14, %c0_15] : memref<64x192xf32, #tpu.memory_space<vmem>>, vector<64x192xf32>
    tpu.vector_store %arg6[%c0_14, %c0_15], %27 {strides = array<i32>} : memref<64x192xf32, #tpu.memory_space<vmem>>, vector<64x192xf32>,
    return
  }
  func.func @transform_0(%arg0: i32) -> (i32, i32) {
    %c0_i32 = arith.constant 0 : i32
    %c0_i32_0 = arith.constant 0 : i32
    return %arg0, %c0_i32 : i32, i32
  }
  func.func @transform_1(%arg0: i32) -> (i32, i32) {
    %c0_i32 = arith.constant 0 : i32
    %c0_i32_0 = arith.constant 0 : i32
    %c0_i32_1 = arith.constant 0 : i32
    return %c0_i32, %c0_i32_0 : i32, i32
  }
  func.func @transform_2(%arg0: i32) -> (i32, i32) {
    %c0_i32 = arith.constant 0 : i32
    %c0_i32_0 = arith.constant 0 : i32
    %c0_i32_1 = arith.constant 0 : i32
    return %c0_i32, %c0_i32_0 : i32, i32
  }
  func.func @transform_3(%arg0: i32) -> (i32, i32) {
    %c0_i32 = arith.constant 0 : i32
    %c0_i32_0 = arith.constant 0 : i32
    %c0_i32_1 = arith.constant 0 : i32
    return %c0_i32, %c0_i32_0 : i32, i32
  }
  func.func @transform_4(%arg0: i32) -> (i32, i32) {
    %c0_i32 = arith.constant 0 : i32
    %c0_i32_0 = arith.constant 0 : i32
    %c0_i32_1 = arith.constant 0 : i32
    return %c0_i32, %c0_i32_0 : i32, i32
  }
  func.func @transform_5(%arg0: i32) -> (i32, i32) {
    %c0_i32 = arith.constant 0 : i32
    %c0_i32_0 = arith.constant 0 : i32
    return %arg0, %c0_i32 : i32, i32
  }
}

</mosaic_0001>

<llo_original>
// kernel: patch_merging_forward.1
$region0: #{patch_merging_forward.1}
  #allocation0 [shape = 'u32[]', space=smem, size = 0x4, offset = 0x4, fixed_abs, tag = 'smem constant byte address 0x4 - core index']
  #allocation1 [shape = 'u32[144,128]{1,0:T(1,128)}', space=vmem, size = 0x12000, scoped, tag = 'internal scratch']
  %s0 = inlined_call_operand.vmem [shape: f32[128,384], index: 0, kind: input, shape index: {}]
  %s1 = inlined_call_operand.vmem [shape: f32[384,192], index: 1, kind: input, shape index: {}]
  %s2 = inlined_call_operand.vmem [shape: f32[1,192], index: 2, kind: input, shape index: {}]
  %s3 = inlined_call_operand.vmem [shape: f32[1,192], index: 3, kind: input, shape index: {}]
  %s4 = inlined_call_operand.vmem [shape: f32[1,192], index: 4, kind: input, shape index: {}]
  %s5 = inlined_call_operand.hbm [shape: f32[128,192], index: 5, kind: output, shape index: {}]
  %s6 = sld [smem:[#allocation0]]
  $region53: #{patch_merging_forward.1} parent=0
    _
  %s8 = ssub.s32 1, %s6
  %s9 = scalar_select 0, %s8, %s6
  $region1: #{patch_merging_forward.1} parent=0
    #allocation2 [shape = 'u8[131072]{0}', space=vmem, size = 0x20000, scoped, tag = 'output window, operand 0']
    #allocation3 [shape = 's32[2]{0}', space=sflag, size = 0x8, scoped, tag = 'scoped memory for patch_merging_forward.1']
    %10 = vsyncpa [#allocation3], 0
    %s11 = scalar_lea.sflag [#allocation3], 1
    %12 = vsyncpa %s11, 0
    loop: start=0, step=1, limit=4
    $region2: #{patch_merging_forward.1} parent=1 // loop_pre_header
      _
    $region3: #{patch_merging_forward.1} parent=1 // loop_header
      %s14 = sphi 0, %s18
      %p15 = scmp.ge.s32.totalorder %s14, 4
      %s24 = sphi 0, %s26
      %s27 = sphi 0, %s24
      %s28 = sphi 0, %s27
      %s44 = sphi 0, %s28
      %s48 = sphi 0, %s48
      %s50 = sphi 0, %s48
      %s51 = sphi 0, %s50
      %s65 = sphi 0, %s51
      %s69 = sphi 0, %s69
      %s71 = sphi 0, %s69
      %s72 = sphi 0, %s71
      %s86 = sphi 0, %s72
      %s90 = sphi 0, %s90
      %s92 = sphi 0, %s90
      %s93 = sphi 0, %s92
      %s107 = sphi 0, %s93
      %s111 = sphi 0, %s111
      %s113 = sphi 0, %s111
      %s114 = sphi 0, %s113
      %s128 = sphi 0, %s114
      %s134 = sphi 0, %s136
      %s137 = sphi 0, %s134
      %s138 = sphi 0, %s137
      %s154 = sphi 0, %s138
    $region4: #{patch_merging_forward.1} parent=1 // loop_header_branch
      %17 = sbr.rel (%p15) target = $region8
    $region5: #{patch_merging_forward.1} parent=1 // loop_body
      %s19 = ssub.s32 %s14, 1
      %s20 = ssub.s32 %s14, 2
      %s21 = sadd.s32 %s14, 1
      %s22 = ssub.s32 %s14, %s21
      %p23 = scmp.eq.s32.totalorder %s22, 0
      %s25 = sadd.s32 %s24, 1
      %s26 = scalar_select %p23, %s24, %s25
      %p29 = pneg %p23
      %p30 = scmp.eq.s32.totalorder %s14, 1
      %p31 = por %p29, %p30
      %p32 = scmp.ne.s32.totalorder %s24, %s27
      %p33 = scmp.eq.s32.totalorder %s14, 0
      %p34 = por %p32, %p33
      %p35 = scmp.ne.s32.totalorder %s24, %s27
      %p36 = scmp.eq.s32.totalorder %s19, 1
      %p37 = por %p35, %p36
      %p38 = scmp.ne.s32.totalorder %s27, %s28
      %p39 = scmp.eq.s32.totalorder %s19, 0
      %p40 = por %p38, %p39
      %p41 = scmp.ne.s32.totalorder %s27, %s28
      %p42 = scmp.eq.s32.totalorder %s20, 1
      %p43 = por %p41, %p42
      %p45 = scmp.ne.s32.totalorder %s28, %s44
      %p46 = scmp.eq.s32.totalorder %s20, 0
      %p47 = por %p45, %p46
      %s49 = sadd.s32 %s48, 1
      %p52 = scmp.eq.s32.totalorder %s14, 1
      %p53 = scmp.ne.s32.totalorder %s48, %s50
      %p54 = scmp.eq.s32.totalorder %s14, 0
      %p55 = por %p53, %p54
      %p56 = scmp.ne.s32.totalorder %s48, %s50
      %p57 = scmp.eq.s32.totalorder %s19, 1
      %p58 = por %p56, %p57
      %p59 = scmp.ne.s32.totalorder %s50, %s51
      %p60 = scmp.eq.s32.totalorder %s19, 0
      %p61 = por %p59, %p60
      %p62 = scmp.ne.s32.totalorder %s50, %s51
      %p63 = scmp.eq.s32.totalorder %s20, 1
      %p64 = por %p62, %p63
      %p66 = scmp.ne.s32.totalorder %s51, %s65
      %p67 = scmp.eq.s32.totalorder %s20, 0
      %p68 = por %p66, %p67
      %s70 = sadd.s32 %s69, 1
      %p73 = scmp.eq.s32.totalorder %s14, 1
      %p74 = scmp.ne.s32.totalorder %s69, %s71
      %p75 = scmp.eq.s32.totalorder %s14, 0
      %p76 = por %p74, %p75
      %p77 = scmp.ne.s32.totalorder %s69, %s71
      %p78 = scmp.eq.s32.totalorder %s19, 1
      %p79 = por %p77, %p78
      %p80 = scmp.ne.s32.totalorder %s71, %s72
      %p81 = scmp.eq.s32.totalorder %s19, 0
      %p82 = por %p80, %p81
      %p83 = scmp.ne.s32.totalorder %s71, %s72
      %p84 = scmp.eq.s32.totalorder %s20, 1
      %p85 = por %p83, %p84
      %p87 = scmp.ne.s32.totalorder %s72, %s86
      %p88 = scmp.eq.s32.totalorder %s20, 0
      %p89 = por %p87, %p88
      %s91 = sadd.s32 %s90, 1
      %p94 = scmp.eq.s32.totalorder %s14, 1
      %p95 = scmp.ne.s32.totalorder %s90, %s92
      %p96 = scmp.eq.s32.totalorder %s14, 0
      %p97 = por %p95, %p96
      %p98 = scmp.ne.s32.totalorder %s90, %s92
      %p99 = scmp.eq.s32.totalorder %s19, 1
      %p100 = por %p98, %p99
      %p101 = scmp.ne.s32.totalorder %s92, %s93
      %p102 = scmp.eq.s32.totalorder %s19, 0
      %p103 = por %p101, %p102
      %p104 = scmp.ne.s32.totalorder %s92, %s93
      %p105 = scmp.eq.s32.totalorder %s20, 1
      %p106 = por %p104, %p105
      %p108 = scmp.ne.s32.totalorder %s93, %s107
      %p109 = scmp.eq.s32.totalorder %s20, 0
      %p110 = por %p108, %p109
      %s112 = sadd.s32 %s111, 1
      %p115 = scmp.eq.s32.totalorder %s14, 1
      %p116 = scmp.ne.s32.totalorder %s111, %s113
      %p117 = scmp.eq.s32.totalorder %s14, 0
      %p118 = por %p116, %p117
      %p119 = scmp.ne.s32.totalorder %s111, %s113
      %p120 = scmp.eq.s32.totalorder %s19, 1
      %p121 = por %p119, %p120
      %p122 = scmp.ne.s32.totalorder %s113, %s114
      %p123 = scmp.eq.s32.totalorder %s19, 0
      %p124 = por %p122, %p123
      %p125 = scmp.ne.s32.totalorder %s113, %s114
      %p126 = scmp.eq.s32.totalorder %s20, 1
      %p127 = por %p125, %p126
      %p129 = scmp.ne.s32.totalorder %s114, %s128
      %p130 = scmp.eq.s32.totalorder %s20, 0
      %p131 = por %p129, %p130
      %s132 = ssub.s32 %s14, %s21
      %p133 = scmp.eq.s32.totalorder %s132, 0
      %s135 = sadd.s32 %s134, 1
      %s136 = scalar_select %p133, %s134, %s135
      %p139 = pneg %p133
      %p140 = scmp.eq.s32.totalorder %s14, 1
      %p141 = por %p139, %p140
      %p142 = scmp.ne.s32.totalorder %s134, %s137
      %p143 = scmp.eq.s32.totalorder %s14, 0
      %p144 = por %p142, %p143
      %p145 = scmp.ne.s32.totalorder %s134, %s137
      %p146 = scmp.eq.s32.totalorder %s19, 1
      %p147 = por %p145, %p146
      %p148 = scmp.ne.s32.totalorder %s137, %s138
      %p149 = scmp.eq.s32.totalorder %s19, 0
      %p150 = por %p148, %p149
      %p151 = scmp.ne.s32.totalorder %s137, %s138
      %p152 = scmp.eq.s32.totalorder %s20, 1
      %p153 = por %p151, %p152
      %p155 = scmp.ne.s32.totalorder %s138, %s154
      %p156 = scmp.eq.s32.totalorder %s20, 0
      %p157 = por %p155, %p156
      %p158 = scmp.le.s32.totalorder 1, %s14
      %p159 = scmp.lt.s32.totalorder %s14, 3
      %p160 = pnand %p158, %p159
      %p161 = pneg %p160
      // Predicated region
      $region9: #{patch_merging_forward.1} parent=5 // pred_check
        _
      $region10: #{patch_merging_forward.1} parent=5 // pred_check_branch
        %163 = sbr.rel (%p160) target = $region12
      $region11: #{patch_merging_forward.1} parent=5 // pred_region
        %s164 = ssub.s32 %s14, 1
        // Predicated region
        $region13: #{patch_merging_forward.1} parent=11 // pred_check
          %p165 = pneg %p61
        $region14: #{patch_merging_forward.1} parent=11 // pred_check_branch
          %167 = sbr.rel (%p165) target = $region16
        $region15: #{patch_merging_forward.1} parent=11 // pred_region
          _
        $region16: #{patch_merging_forward.1} parent=11 // pred_fallthru
          _
        // Predicated region
        $region17: #{patch_merging_forward.1} parent=11 // pred_check
          %p168 = pneg %p82
        $region18: #{patch_merging_forward.1} parent=11 // pred_check_branch
          %170 = sbr.rel (%p168) target = $region20
        $region19: #{patch_merging_forward.1} parent=11 // pred_region
          _
        $region20: #{patch_merging_forward.1} parent=11 // pred_fallthru
          _
        // Predicated region
        $region21: #{patch_merging_forward.1} parent=11 // pred_check
          %p171 = pneg %p103
        $region22: #{patch_merging_forward.1} parent=11 // pred_check_branch
          %173 = sbr.rel (%p171) target = $region24
        $region23: #{patch_merging_forward.1} parent=11 // pred_region
          _
        $region24: #{patch_merging_forward.1} parent=11 // pred_fallthru
          _
        // Predicated region
        $region25: #{patch_merging_forward.1} parent=11 // pred_check
          %p174 = pneg %p124
        $region26: #{patch_merging_forward.1} parent=11 // pred_check_branch
          %176 = sbr.rel (%p174) target = $region28
        $region27: #{patch_merging_forward.1} parent=11 // pred_region
          _
        $region28: #{patch_merging_forward.1} parent=11 // pred_fallthru
          _
      $region12: #{patch_merging_forward.1} parent=5 // pred_fallthru
        _
      %p177 = scmp.lt.s32.totalorder %s14, 2
      // Predicated region
      $region29: #{patch_merging_forward.1} parent=5 // pred_check
        %p178 = pneg %p177
      $region30: #{patch_merging_forward.1} parent=5 // pred_check_branch
        %180 = sbr.rel (%p178) target = $region32
      $region31: #{patch_merging_forward.1} parent=5 // pred_region
        // Predicated region
        $region33: #{patch_merging_forward.1} parent=31 // pred_check
          %p181 = pneg %p34
        $region34: #{patch_merging_forward.1} parent=31 // pred_check_branch
          %183 = sbr.rel (%p181) target = $region36
        $region35: #{patch_merging_forward.1} parent=31 // pred_region
          %s184 = smul.u32 8, %s14
          %p185 = scmp.lt.s32.totalorder %s184, 15
          %s186 = scalar_select %p185, %s184, 15
          %s187 = smul.addr %s186, 3
          %s188 = smul.addr %s187, 8
          %s189 = scalar_lea.vmem %s0, %s188
          %s190 = smul.u32 8, %s14
        $region36: #{patch_merging_forward.1} parent=31 // pred_fallthru
          _
      $region32: #{patch_merging_forward.1} parent=5 // pred_fallthru
        _
      %p191 = scmp.le.s32.totalorder 1, %s14
      %p192 = scmp.lt.s32.totalorder %s14, 3
      %p193 = pnand %p191, %p192
      %p194 = pneg %p193
      // Predicated region
      $region37: #{patch_merging_forward.1} parent=5 // pred_check
        _
      $region38: #{patch_merging_forward.1} parent=5 // pred_check_branch
        %196 = sbr.rel (%p193) target = $region40
      $region39: #{patch_merging_forward.1} parent=5 // pred_region
        %s197 = ssub.s32 %s14, 1
        %s198 = smul.u32 8, %s19
        %p199 = scmp.lt.s32.totalorder %s198, 15
        %s200 = scalar_select %p199, %s198, 15
        %s201 = smul.addr %s200, 3
        %s202 = smul.addr %s201, 8
        %s203 = scalar_lea.vmem %s0, %s202
        %p204 = pneg %p40
        %p205 = pneg %p37
        %p206 = pneg %p61
        %p207 = pneg %p58
        %p208 = pneg %p82
        %p209 = pneg %p79
        %p210 = pneg %p103
        %p211 = pneg %p100
        %p212 = pneg %p124
        %p213 = pneg %p121
        %p214 = pneg %p150
        %p215 = pneg %p147
        %s216 = sand.u32 %s137, 1
        %s217 = scalar_lea.sflag [#allocation3], %s216
        %s218 = sand.u32 %s137, 1
        %s219 = smul.addr %s218, 128
        %s220 = scalar_lea.vmem [#allocation2], %s219
        %s221 = smul.u32 8, %s19
        %p222 = scmp.lt.s32.totalorder %s221, 15
        %s223 = scalar_select %p222, %s221, 15
        %s224 = smul.addr %s223, 3
        %s225 = smul.addr %s224, 8
        %s226 = scalar_lea.vmem %s0, %s225
        %s227 = smul.u32 8, %s19
        %s228 = smul.u32 8, %s19
        %v229 = vld [vmem:[%s226] sm:$0xff]
        %v230 = vld [vmem:[%s226 + $0x8] sm:$0xff]
        %v231 = vld [vmem:[%s226 + $0x10] sm:$0xff]
        %v232 = vld [vmem:[%s226 + $0x18] sm:$0xff]
        %v233 = vld [vmem:[%s226 + $0x20] sm:$0xff]
        %v234 = vld [vmem:[%s226 + $0x28] sm:$0xff]
        %v235 = vld [vmem:[%s226 + $0x30] sm:$0xff]
        %v236 = vld [vmem:[%s226 + $0x38] sm:$0xff]
        %v237 = vld [vmem:[%s226 + $0x40] sm:$0xff]
        %v238 = vld [vmem:[%s226 + $0x48] sm:$0xff]
        %v239 = vld [vmem:[%s226 + $0x50] sm:$0xff]
        %v240 = vld [vmem:[%s226 + $0x58] sm:$0xff]
        %v241 = vld [vmem:[%s226 + $0x60] sm:$0xff]
        %v242 = vld [vmem:[%s226 + $0x68] sm:$0xff]
        %v243 = vld [vmem:[%s226 + $0x70] sm:$0xff]
        %v244 = vld [vmem:[%s226 + $0x78] sm:$0xff]
        %v245 = vld [vmem:[%s226 + $0x80] sm:$0xff]
        %v246 = vld [vmem:[%s226 + $0x88] sm:$0xff]
        %v247 = vld [vmem:[%s226 + $0x90] sm:$0xff]
        %v248 = vld [vmem:[%s226 + $0x98] sm:$0xff]
        %v249 = vld [vmem:[%s226 + $0xa0] sm:$0xff]
        %v250 = vld [vmem:[%s226 + $0xa8] sm:$0xff]
        %v251 = vld [vmem:[%s226 + $0xb0] sm:$0xff]
        %v252 = vld [vmem:[%s226 + $0xb8] sm:$0xff]
        %v253 = vld [vmem:[%s1] sm:$0xff]
        %v254 = vld [vmem:[%s1 + $0x8] sm:$0xff]
        %v255 = vld [vmem:[%s1 + $0x10] sm:$0xff]
        %v256 = vld [vmem:[%s1 + $0x18] sm:$0xff]
        %v257 = vld [vmem:[%s1 + $0x20] sm:$0xff]
        %v258 = vld [vmem:[%s1 + $0x28] sm:$0xff]
        %v259 = vld [vmem:[%s1 + $0x30] sm:$0xff]
        %v260 = vld [vmem:[%s1 + $0x38] sm:$0xff]
        %v261 = vld [vmem:[%s1 + $0x40] sm:$0xff]
        %v262 = vld [vmem:[%s1 + $0x48] sm:$0xff]
        %v263 = vld [vmem:[%s1 + $0x50] sm:$0xff]
        %v264 = vld [vmem:[%s1 + $0x58] sm:$0xff]
        %v265 = vld [vmem:[%s1 + $0x60] sm:$0xff]
        %v266 = vld [vmem:[%s1 + $0x68] sm:$0xff]
        %v267 = vld [vmem:[%s1 + $0x70] sm:$0xff]
        %v268 = vld [vmem:[%s1 + $0x78] sm:$0xff]
        %v269 = vld [vmem:[%s1 + $0x80] sm:$0xff]
        %v270 = vld [vmem:[%s1 + $0x88] sm:$0xff]
        %v271 = vld [vmem:[%s1 + $0x90] sm:$0xff]
        %v272 = vld [vmem:[%s1 + $0x98] sm:$0xff]
        %v273 = vld [vmem:[%s1 + $0xa0] sm:$0xff]
        %v274 = vld [vmem:[%s1 + $0xa8] sm:$0xff]
        %v275 = vld [vmem:[%s1 + $0xb0] sm:$0xff]
        %v276 = vld [vmem:[%s1 + $0xb8] sm:$0xff]
        %v277 = vld [vmem:[%s1 + $0xc0] sm:$0xff]
        %v278 = vld [vmem:[%s1 + $0xc8] sm:$0xff]
        %v279 = vld [vmem:[%s1 + $0xd0] sm:$0xff]
        %v280 = vld [vmem:[%s1 + $0xd8] sm:$0xff]
        %v281 = vld [vmem:[%s1 + $0xe0] sm:$0xff]
        %v282 = vld [vmem:[%s1 + $0xe8] sm:$0xff]
        %v283 = vld [vmem:[%s1 + $0xf0] sm:$0xff]
        %v284 = vld [vmem:[%s1 + $0xf8] sm:$0xff]
        %v285 = vld [vmem:[%s1 + $0x100] sm:$0xff]
        %v286 = vld [vmem:[%s1 + $0x108] sm:$0xff]
        %v287 = vld [vmem:[%s1 + $0x110] sm:$0xff]
        %v288 = vld [vmem:[%s1 + $0x118] sm:$0xff]
        %v289 = vld [vmem:[%s1 + $0x120] sm:$0xff]
        %v290 = vld [vmem:[%s1 + $0x128] sm:$0xff]
        %v291 = vld [vmem:[%s1 + $0x130] sm:$0xff]
        %v292 = vld [vmem:[%s1 + $0x138] sm:$0xff]
        %v293 = vld [vmem:[%s1 + $0x140] sm:$0xff]
        %v294 = vld [vmem:[%s1 + $0x148] sm:$0xff]
        %v295 = vld [vmem:[%s1 + $0x150] sm:$0xff]
        %v296 = vld [vmem:[%s1 + $0x158] sm:$0xff]
        %v297 = vld [vmem:[%s1 + $0x160] sm:$0xff]
        %v298 = vld [vmem:[%s1 + $0x168] sm:$0xff]
        %v299 = vld [vmem:[%s1 + $0x170] sm:$0xff]
        %v300 = vld [vmem:[%s1 + $0x178] sm:$0xff]
        %v301 = vld [vmem:[%s1 + $0x180] sm:$0xff]
        %v302 = vld [vmem:[%s1 + $0x188] sm:$0xff]
        %v303 = vld [vmem:[%s1 + $0x190] sm:$0xff]
        %v304 = vld [vmem:[%s1 + $0x198] sm:$0xff]
        %v305 = vld [vmem:[%s1 + $0x1a0] sm:$0xff]
        %v306 = vld [vmem:[%s1 + $0x1a8] sm:$0xff]
        %v307 = vld [vmem:[%s1 + $0x1b0] sm:$0xff]
        %v308 = vld [vmem:[%s1 + $0x1b8] sm:$0xff]
        %v309 = vld [vmem:[%s1 + $0x1c0] sm:$0xff]
        %v310 = vld [vmem:[%s1 + $0x1c8] sm:$0xff]
        %v311 = vld [vmem:[%s1 + $0x1d0] sm:$0xff]
        %v312 = vld [vmem:[%s1 + $0x1d8] sm:$0xff]
        %v313 = vld [vmem:[%s1 + $0x1e0] sm:$0xff]
        %v314 = vld [vmem:[%s1 + $0x1e8] sm:$0xff]
        %v315 = vld [vmem:[%s1 + $0x1f0] sm:$0xff]
        %v316 = vld [vmem:[%s1 + $0x1f8] sm:$0xff]
        %v317 = vld [vmem:[%s1 + $0x200] sm:$0xff]
        %v318 = vld [vmem:[%s1 + $0x208] sm:$0xff]
        %v319 = vld [vmem:[%s1 + $0x210] sm:$0xff]
        %v320 = vld [vmem:[%s1 + $0x218] sm:$0xff]
        %v321 = vld [vmem:[%s1 + $0x220] sm:$0xff]
        %v322 = vld [vmem:[%s1 + $0x228] sm:$0xff]
        %v323 = vld [vmem:[%s1 + $0x230] sm:$0xff]
        %v324 = vld [vmem:[%s1 + $0x238] sm:$0xff]
        %v325 = vld [vmem:[%s1 + $0x240] sm:$0xff]
        %v326 = vld [vmem:[%s1 + $0x248] sm:$0xff]
        %v327 = vld [vmem:[%s1 + $0x250] sm:$0xff]
        %v328 = vld [vmem:[%s1 + $0x258] sm:$0xff]
        %v329 = vld [vmem:[%s1 + $0x260] sm:$0xff]
        %v330 = vld [vmem:[%s1 + $0x268] sm:$0xff]
        %v331 = vld [vmem:[%s1 + $0x270] sm:$0xff]
        %v332 = vld [vmem:[%s1 + $0x278] sm:$0xff]
        %v333 = vld [vmem:[%s1 + $0x280] sm:$0xff]
        %v334 = vld [vmem:[%s1 + $0x288] sm:$0xff]
        %v335 = vld [vmem:[%s1 + $0x290] sm:$0xff]
        %v336 = vld [vmem:[%s1 + $0x298] sm:$0xff]
        %v337 = vld [vmem:[%s1 + $0x2a0] sm:$0xff]
        %v338 = vld [vmem:[%s1 + $0x2a8] sm:$0xff]
        %v339 = vld [vmem:[%s1 + $0x2b0] sm:$0xff]
        %v340 = vld [vmem:[%s1 + $0x2b8] sm:$0xff]
        %v341 = vld [vmem:[%s1 + $0x2c0] sm:$0xff]
        %v342 = vld [vmem:[%s1 + $0x2c8] sm:$0xff]
        %v343 = vld [vmem:[%s1 + $0x2d0] sm:$0xff]
        %v344 = vld [vmem:[%s1 + $0x2d8] sm:$0xff]
        %v345 = vld [vmem:[%s1 + $0x2e0] sm:$0xff]
        %v346 = vld [vmem:[%s1 + $0x2e8] sm:$0xff]
        %v347 = vld [vmem:[%s1 + $0x2f0] sm:$0xff]
        %v348 = vld [vmem:[%s1 + $0x2f8] sm:$0xff]
        %v349 = vld [vmem:[%s2] sm:$0x3]
        %v351 = vlaneseq
        %v352 = vshrl.u32 %v351, 7
        %v353 = vsub.s32 0, %v352
        %v354 = vrot.slane %v349, %v353
        %v355 = vlaneseq
        %v356 = vshrl.u32 %v355, 7
        %v357 = vsub.s32 1, %v356
        %v358 = vrot.slane %v349, %v357
        %361 = vmatprep.subr.mxu0 %v254
        %362 = vmatpush1.msra.mxu0 %v253
        %363 = vmatprep.subr.mxu0 %v256
        %364 = vmatpush1.msra.mxu0 %v255
        %365 = vmatprep.subr.mxu0 %v258
        %366 = vmatpush1.msra.mxu0 %v257
        %367 = vmatprep.subr.mxu0 %v260
        %368 = vmatpush1.msra.mxu0 %v259
        %369 = vmatprep.subr.mxu0 %v262
        %370 = vmatpush1.msra.mxu0 %v261
        %371 = vmatprep.subr.mxu0 %v264
        %372 = vmatpush1.msra.mxu0 %v263
        %373 = vmatprep.subr.mxu0 %v266
        %374 = vmatpush1.msra.mxu0 %v265
        %375 = vmatprep.subr.mxu0 %v268
        %376 = vmatpush1.msra.mxu0 %v267
        %377 = vmatprep.subr.mxu0 %v270
        %378 = vmatpush1.msra.mxu0 %v269
        %379 = vmatprep.subr.mxu0 %v272
        %380 = vmatpush1.msra.mxu0 %v271
        %381 = vmatprep.subr.mxu0 %v274
        %382 = vmatpush1.msra.mxu0 %v273
        %383 = vmatprep.subr.mxu0 %v276
        %384 = vmatpush1.msra.mxu0 %v275
        %385 = vmatprep.subr.mxu0 %v278
        %386 = vmatpush1.msra.mxu0 %v277
        %387 = vmatprep.subr.mxu0 %v280
        %388 = vmatpush1.msra.mxu0 %v279
        %389 = vmatprep.subr.mxu0 %v282
        %390 = vmatpush1.msra.mxu0 %v281
        %391 = vmatprep.subr.mxu0 %v284
        %392 = vmatpush1.msra.mxu0 %v283
        %393 = vmatprep.subr.mxu0 %v286
        %394 = vmatpush1.msra.mxu0 %v285
        %395 = vmatprep.subr.mxu0 %v288
        %396 = vmatpush1.msra.mxu0 %v287
        %397 = vmatprep.subr.mxu0 %v290
        %398 = vmatpush1.msra.mxu0 %v289
        %399 = vmatprep.subr.mxu0 %v292
        %400 = vmatpush1.msra.mxu0 %v291
        %401 = vmatprep.subr.mxu0 %v294
        %402 = vmatpush1.msra.mxu0 %v293
        %403 = vmatprep.subr.mxu0 %v296
        %404 = vmatpush1.msra.mxu0 %v295
        %405 = vmatprep.subr.mxu0 %v298
        %406 = vmatpush1.msra.mxu0 %v297
        %407 = vmatprep.subr.mxu0 %v300
        %408 = vmatpush1.msra.mxu0 %v299
        %409 = vmatprep.subr.mxu0 %v302
        %410 = vmatpush1.msra.mxu0 %v301
        %411 = vmatprep.subr.mxu0 %v304
        %412 = vmatpush1.msra.mxu0 %v303
        %413 = vmatprep.subr.mxu0 %v306
        %414 = vmatpush1.msra.mxu0 %v305
        %415 = vmatprep.subr.mxu0 %v308
        %416 = vmatpush1.msra.mxu0 %v307
        %417 = vmatprep.subr.mxu0 %v310
        %418 = vmatpush1.msra.mxu0 %v309
        %419 = vmatprep.subr.mxu0 %v312
        %420 = vmatpush1.msra.mxu0 %v311
        %421 = vmatprep.subr.mxu0 %v314
        %422 = vmatpush1.msra.mxu0 %v313
        %423 = vmatprep.subr.mxu0 %v316
        %424 = vmatpush1.msra.mxu0 %v315
        %425 = vmatprep.mubr.f32.mxu0 %v230
        %426 = vmatmul.mubr.f32.gmra.mrb[0].mxu0 %v229
        %v427 = vpop.f32.mrb[0].mxu0
        %v428 = vadd.f32 %v354, %v427
        %v429 = vpop.f32.mrb[0].mxu0
        %v430 = vadd.f32 %v358, %v429
        %431 = vmatprep.mubr.f32.mxu0 %v233
        %432 = vmatmul.mubr.f32.gmra.mrb[0].mxu0 %v232
        %v433 = vpop.f32.mrb[0].mxu0
        %v434 = vadd.f32 %v354, %v433
        %v435 = vpop.f32.mrb[0].mxu0
        %v436 = vadd.f32 %v358, %v435
        %437 = vmatprep.mubr.f32.mxu0 %v236
        %438 = vmatmul.mubr.f32.gmra.mrb[0].mxu0 %v235
        %v439 = vpop.f32.mrb[0].mxu0
        %v440 = vadd.f32 %v354, %v439
        %v441 = vpop.f32.mrb[0].mxu0
        %v442 = vadd.f32 %v358, %v441
        %443 = vmatprep.mubr.f32.mxu0 %v239
        %444 = vmatmul.mubr.f32.gmra.mrb[0].mxu0 %v238
        %v445 = vpop.f32.mrb[0].mxu0
        %v446 = vadd.f32 %v354, %v445
        %v447 = vpop.f32.mrb[0].mxu0
        %v448 = vadd.f32 %v358, %v447
        %449 = vmatprep.mubr.f32.mxu0 %v242
        %450 = vmatmul.mubr.f32.gmra.mrb[0].mxu0 %v241
        %v451 = vpop.f32.mrb[0].mxu0
        %v452 = vadd.f32 %v354, %v451
        %v453 = vpop.f32.mrb[0].mxu0
        %v454 = vadd.f32 %v358, %v453
        %455 = vmatprep.mubr.f32.mxu0 %v245
        %456 = vmatmul.mubr.f32.gmra.mrb[0].mxu0 %v244
        %v457 = vpop.f32.mrb[0].mxu0
        %v458 = vadd.f32 %v354, %v457
        %v459 = vpop.f32.mrb[0].mxu0
        %v460 = vadd.f32 %v358, %v459
        %461 = vmatprep.mubr.f32.mxu0 %v248
        %462 = vmatmul.mubr.f32.gmra.mrb[0].mxu0 %v247
        %v463 = vpop.f32.mrb[0].mxu0
        %v464 = vadd.f32 %v354, %v463
        %v465 = vpop.f32.mrb[0].mxu0
        %v466 = vadd.f32 %v358, %v465
        %467 = vmatprep.mubr.f32.mxu0 %v251
        %468 = vmatmul.mubr.f32.gmra.mrb[0].mxu0 %v250
        %v469 = vpop.f32.mrb[0].mxu0
        %v470 = vadd.f32 %v354, %v469
        %v471 = vpop.f32.mrb[0].mxu0
        %v472 = vadd.f32 %v358, %v471
        %473 = vdwg.mxu0
        %474 = vmatprep.subr.mxu0 %v318
        %475 = vmatpush1.msra.mxu0 %v317
        %476 = vmatprep.subr.mxu0 %v320
        %477 = vmatpush1.msra.mxu0 %v319
        %478 = vmatprep.subr.mxu0 %v322
        %479 = vmatpush1.msra.mxu0 %v321
        %480 = vmatprep.subr.mxu0 %v324
        %481 = vmatpush1.msra.mxu0 %v323
        %482 = vmatprep.subr.mxu0 %v326
        %483 = vmatpush1.msra.mxu0 %v325
        %484 = vmatprep.subr.mxu0 %v328
        %485 = vmatpush1.msra.mxu0 %v327
        %486 = vmatprep.subr.mxu0 %v330
        %487 = vmatpush1.msra.mxu0 %v329
        %488 = vmatprep.subr.mxu0 %v332
        %489 = vmatpush1.msra.mxu0 %v331
        %490 = vmatprep.subr.mxu0 %v334
        %491 = vmatpush1.msra.mxu0 %v333
        %492 = vmatprep.subr.mxu0 %v336
        %493 = vmatpush1.msra.mxu0 %v335
        %494 = vmatprep.subr.mxu0 %v338
        %495 = vmatpush1.msra.mxu0 %v337
        %496 = vmatprep.subr.mxu0 %v340
        %497 = vmatpush1.msra.mxu0 %v339
        %498 = vmatprep.subr.mxu0 %v342
        %499 = vmatpush1.msra.mxu0 %v341
        %500 = vmatprep.subr.mxu0 %v344
        %501 = vmatpush1.msra.mxu0 %v343
        %502 = vmatprep.subr.mxu0 %v346
        %503 = vmatpush1.msra.mxu0 %v345
        %504 = vmatprep.subr.mxu0 %v348
        %505 = vmatpush1.msra.mxu0 %v347
        %506 = vmatprep.subr.mxu0 0.0
        %507 = vmatpush1.msra.mxu0 0.0
        %508 = vmatprep.subr.mxu0 0.0
        %509 = vmatpush1.msra.mxu0 0.0
        %510 = vmatprep.subr.mxu0 0.0
        %511 = vmatpush1.msra.mxu0 0.0
        %512 = vmatprep.subr.mxu0 0.0
        %513 = vmatpush1.msra.mxu0 0.0
        %514 = vmatprep.subr.mxu0 0.0
        %515 = vmatpush1.msra.mxu0 0.0
        %516 = vmatprep.subr.mxu0 0.0
        %517 = vmatpush1.msra.mxu0 0.0
        %518 = vmatprep.subr.mxu0 0.0
        %519 = vmatpush1.msra.mxu0 0.0
        %520 = vmatprep.subr.mxu0 0.0
        %521 = vmatpush1.msra.mxu0 0.0
        %522 = vmatprep.subr.mxu0 0.0
        %523 = vmatpush1.msra.mxu0 0.0
        %524 = vmatprep.subr.mxu0 0.0
        %525 = vmatpush1.msra.mxu0 0.0
        %526 = vmatprep.subr.mxu0 0.0
        %527 = vmatpush1.msra.mxu0 0.0
        %528 = vmatprep.subr.mxu0 0.0
        %529 = vmatpush1.msra.mxu0 0.0
        %530 = vmatprep.subr.mxu0 0.0
        %531 = vmatpush1.msra.mxu0 0.0
        %532 = vmatprep.subr.mxu0 0.0
        %533 = vmatpush1.msra.mxu0 0.0
        %534 = vmatprep.subr.mxu0 0.0
        %535 = vmatpush1.msra.mxu0 0.0
        %536 = vmatprep.subr.mxu0 0.0
        %537 = vmatpush1.msra.mxu0 0.0
        %538 = vmatprep.mubr.f32.mxu0 0.0
        %539 = vmatmul.mubr.f32.gmra.mrb[0].mxu0 %v231
        %v540 = vpop.f32.mrb[0].mxu0
        %v541 = vadd.f32 %v428, %v540
        %v542 = vpop.f32.mrb[0].mxu0
        %v543 = vadd.f32 %v430, %v542
        %544 = vmatprep.mubr.f32.mxu0 0.0
        %545 = vmatmul.mubr.f32.gmra.mrb[0].mxu0 %v234
        %v546 = vpop.f32.mrb[0].mxu0
        %v547 = vadd.f32 %v434, %v546
        %v548 = vpop.f32.mrb[0].mxu0
        %v549 = vadd.f32 %v436, %v548
        %550 = vmatprep.mubr.f32.mxu0 0.0
        %551 = vmatmul.mubr.f32.gmra.mrb[0].mxu0 %v237
        %v552 = vpop.f32.mrb[0].mxu0
        %v553 = vadd.f32 %v440, %v552
        %v554 = vpop.f32.mrb[0].mxu0
        %v555 = vadd.f32 %v442, %v554
        %556 = vmatprep.mubr.f32.mxu0 0.0
        %557 = vmatmul.mubr.f32.gmra.mrb[0].mxu0 %v240
        %v558 = vpop.f32.mrb[0].mxu0
        %v559 = vadd.f32 %v446, %v558
        %v560 = vpop.f32.mrb[0].mxu0
        %v561 = vadd.f32 %v448, %v560
        %562 = vmatprep.mubr.f32.mxu0 0.0
        %563 = vmatmul.mubr.f32.gmra.mrb[0].mxu0 %v243
        %v564 = vpop.f32.mrb[0].mxu0
        %v565 = vadd.f32 %v452, %v564
        %v566 = vpop.f32.mrb[0].mxu0
        %v567 = vadd.f32 %v454, %v566
        %568 = vmatprep.mubr.f32.mxu0 0.0
        %569 = vmatmul.mubr.f32.gmra.mrb[0].mxu0 %v246
        %v570 = vpop.f32.mrb[0].mxu0
        %v571 = vadd.f32 %v458, %v570
        %v572 = vpop.f32.mrb[0].mxu0
        %v573 = vadd.f32 %v460, %v572
        %574 = vmatprep.mubr.f32.mxu0 0.0
        %575 = vmatmul.mubr.f32.gmra.mrb[0].mxu0 %v249
        %v576 = vpop.f32.mrb[0].mxu0
        %v577 = vadd.f32 %v464, %v576
        %v578 = vpop.f32.mrb[0].mxu0
        %v579 = vadd.f32 %v466, %v578
        %580 = vmatprep.mubr.f32.mxu0 0.0
        %581 = vmatmul.mubr.f32.gmra.mrb[0].mxu0 %v252
        %v582 = vpop.f32.mrb[0].mxu0
        %v583 = vadd.f32 %v470, %v582
        %v584 = vpop.f32.mrb[0].mxu0
        %v585 = vadd.f32 %v472, %v584
        %586 = vdwg.mxu0
        %vm587 = vcmask 523264
        %v588 = vsel %vm587, %v543, 0.0
        %v589 = vadd.f32 %v541, %v588
        %590 = vadd.xlane.f32.xlu0 %v589
        %v591 = vpop.xlane.xlu0 %590
        %v592 = vsel %vm587, %v549, 0.0
        %v593 = vadd.f32 %v547, %v592
        %594 = vadd.xlane.f32.xlu0 %v593
        %v595 = vpop.xlane.xlu0 %594
        %v596 = vsel %vm587, %v555, 0.0
        %v597 = vadd.f32 %v553, %v596
        %598 = vadd.xlane.f32.xlu0 %v597
        %v599 = vpop.xlane.xlu0 %598
        %v600 = vsel %vm587, %v561, 0.0
        %v601 = vadd.f32 %v559, %v600
        %602 = vadd.xlane.f32.xlu0 %v601
        %v603 = vpop.xlane.xlu0 %602
        %v604 = vsel %vm587, %v567, 0.0
        %v605 = vadd.f32 %v565, %v604
        %606 = vadd.xlane.f32.xlu0 %v605
        %v607 = vpop.xlane.xlu0 %606
        %v608 = vsel %vm587, %v573, 0.0
        %v609 = vadd.f32 %v571, %v608
        %610 = vadd.xlane.f32.xlu0 %v609
        %v611 = vpop.xlane.xlu0 %610
        %v612 = vsel %vm587, %v579, 0.0
        %v613 = vadd.f32 %v577, %v612
        %614 = vadd.xlane.f32.xlu0 %v613
        %v615 = vpop.xlane.xlu0 %614
        %v616 = vsel %vm587, %v585, 0.0
        %v617 = vadd.f32 %v583, %v616
        %618 = vadd.xlane.f32.xlu0 %v617
        %v619 = vpop.xlane.xlu0 %618
        %v620 = vrcp.pop 192.0
        %v621 = vmul.f32 %v591, %v620
        %v622 = vmul.f32 %v595, %v620
        %v623 = vmul.f32 %v599, %v620
        %v624 = vmul.f32 %v603, %v620
        %v625 = vmul.f32 %v607, %v620
        %v626 = vmul.f32 %v611, %v620
        %v627 = vmul.f32 %v615, %v620
        %v628 = vmul.f32 %v619, %v620
        %v629 = vsub.f32 %v541, %v621
        %v630 = vsub.f32 %v543, %v621
        %v631 = vsub.f32 %v547, %v622
        %v632 = vsub.f32 %v549, %v622
        %v633 = vsub.f32 %v553, %v623
        %v634 = vsub.f32 %v555, %v623
        %v635 = vsub.f32 %v559, %v624
        %v636 = vsub.f32 %v561, %v624
        %v637 = vsub.f32 %v565, %v625
        %v638 = vsub.f32 %v567, %v625
        %v639 = vsub.f32 %v571, %v626
        %v640 = vsub.f32 %v573, %v626
        %v641 = vsub.f32 %v577, %v627
        %v642 = vsub.f32 %v579, %v627
        %v643 = vsub.f32 %v583, %v628
        %v644 = vsub.f32 %v585, %v628
        %v645 = vmul.f32 %v629, %v629
        %v646 = vmul.f32 %v630, %v630
        %v647 = vmul.f32 %v631, %v631
        %v648 = vmul.f32 %v632, %v632
        %v649 = vmul.f32 %v633, %v633
        %v650 = vmul.f32 %v634, %v634
        %v651 = vmul.f32 %v635, %v635
        %v652 = vmul.f32 %v636, %v636
        %v653 = vmul.f32 %v637, %v637
        %v654 = vmul.f32 %v638, %v638
        %v655 = vmul.f32 %v639, %v639
        %v656 = vmul.f32 %v640, %v640
        %v657 = vmul.f32 %v641, %v641
        %v658 = vmul.f32 %v642, %v642
        %v659 = vmul.f32 %v643, %v643
        %v660 = vmul.f32 %v644, %v644
        %v661 = vsel %vm587, %v646, 0.0
        %v662 = vadd.f32 %v645, %v661
        %663 = vadd.xlane.f32.xlu0 %v662
        %v664 = vpop.xlane.xlu0 %663
        %v665 = vsel %vm587, %v648, 0.0
        %v666 = vadd.f32 %v647, %v665
        %667 = vadd.xlane.f32.xlu0 %v666
        %v668 = vpop.xlane.xlu0 %667
        %v669 = vsel %vm587, %v650, 0.0
        %v670 = vadd.f32 %v649, %v669
        %671 = vadd.xlane.f32.xlu0 %v670
        %v672 = vpop.xlane.xlu0 %671
        %v673 = vsel %vm587, %v652, 0.0
        %v674 = vadd.f32 %v651, %v673
        %675 = vadd.xlane.f32.xlu0 %v674
        %v676 = vpop.xlane.xlu0 %675
        %v677 = vsel %vm587, %v654, 0.0
        %v678 = vadd.f32 %v653, %v677
        %679 = vadd.xlane.f32.xlu0 %v678
        %v680 = vpop.xlane.xlu0 %679
        %v681 = vsel %vm587, %v656, 0.0
        %v682 = vadd.f32 %v655, %v681
        %683 = vadd.xlane.f32.xlu0 %v682
        %v684 = vpop.xlane.xlu0 %683
        %v685 = vsel %vm587, %v658, 0.0
        %v686 = vadd.f32 %v657, %v685
        %687 = vadd.xlane.f32.xlu0 %v686
        %v688 = vpop.xlane.xlu0 %687
        %v689 = vsel %vm587, %v660, 0.0
        %v690 = vadd.f32 %v659, %v689
        %691 = vadd.xlane.f32.xlu0 %v690
        %v692 = vpop.xlane.xlu0 %691
        %v693 = vmul.f32 %v664, %v620
        %v694 = vmul.f32 %v668, %v620
        %v695 = vmul.f32 %v672, %v620
        %v696 = vmul.f32 %v676, %v620
        %v697 = vmul.f32 %v680, %v620
        %v698 = vmul.f32 %v684, %v620
        %v699 = vmul.f32 %v688, %v620
        %v700 = vmul.f32 %v692, %v620
        %v701 = vadd.f32 %v693, 1e-05
        %v702 = vadd.f32 %v694, 1e-05
        %v703 = vadd.f32 %v695, 1e-05
        %v704 = vadd.f32 %v696, 1e-05
        %v705 = vadd.f32 %v697, 1e-05
        %v706 = vadd.f32 %v698, 1e-05
        %v707 = vadd.f32 %v699, 1e-05
        %v708 = vadd.f32 %v700, 1e-05
        %v709 = vrsqrt.pop %v701
        %v710 = vrsqrt.pop %v702
        %v711 = vrsqrt.pop %v703
        %v712 = vrsqrt.pop %v704
        %v713 = vrsqrt.pop %v705
        %v714 = vrsqrt.pop %v706
        %v715 = vrsqrt.pop %v707
        %v716 = vrsqrt.pop %v708
        %v717 = vmul.f32 %v629, %v709
        %v718 = vmul.f32 %v630, %v709
        %v719 = vmul.f32 %v631, %v710
        %v720 = vmul.f32 %v632, %v710
        %v721 = vmul.f32 %v633, %v711
        %v722 = vmul.f32 %v634, %v711
        %v723 = vmul.f32 %v635, %v712
        %v724 = vmul.f32 %v636, %v712
        %v725 = vmul.f32 %v637, %v713
        %v726 = vmul.f32 %v638, %v713
        %v727 = vmul.f32 %v639, %v714
        %v728 = vmul.f32 %v640, %v714
        %v729 = vmul.f32 %v641, %v715
        %v730 = vmul.f32 %v642, %v715
        %v731 = vmul.f32 %v643, %v716
        %v732 = vmul.f32 %v644, %v716
        %v733 = vld [vmem:[%s3] sm:$0x3]
        %v735 = vlaneseq
        %v736 = vshrl.u32 %v735, 7
        %v737 = vsub.s32 0, %v736
        %v738 = vrot.slane %v733, %v737
        %v739 = vlaneseq
        %v740 = vshrl.u32 %v739, 7
        %v741 = vsub.s32 1, %v740
        %v742 = vrot.slane %v733, %v741
        %v745 = vmul.f32 %v717, %v738
        %v746 = vmul.f32 %v718, %v742
        %v747 = vmul.f32 %v719, %v738
        %v748 = vmul.f32 %v720, %v742
        %v749 = vmul.f32 %v721, %v738
        %v750 = vmul.f32 %v722, %v742
        %v751 = vmul.f32 %v723, %v738
        %v752 = vmul.f32 %v724, %v742
        %v753 = vmul.f32 %v725, %v738
        %v754 = vmul.f32 %v726, %v742
        %v755 = vmul.f32 %v727, %v738
        %v756 = vmul.f32 %v728, %v742
        %v757 = vmul.f32 %v729, %v738
        %v758 = vmul.f32 %v730, %v742
        %v759 = vmul.f32 %v731, %v738
        %v760 = vmul.f32 %v732, %v742
        %v761 = vld [vmem:[%s4] sm:$0x3]
        %v763 = vlaneseq
        %v764 = vshrl.u32 %v763, 7
        %v765 = vsub.s32 0, %v764
        %v766 = vrot.slane %v761, %v765
        %v767 = vlaneseq
        %v768 = vshrl.u32 %v767, 7
        %v769 = vsub.s32 1, %v768
        %v770 = vrot.slane %v761, %v769
        %v773 = vadd.f32 %v745, %v766
        %v774 = vadd.f32 %v746, %v770
        %v775 = vadd.f32 %v747, %v766
        %v776 = vadd.f32 %v748, %v770
        %v777 = vadd.f32 %v749, %v766
        %v778 = vadd.f32 %v750, %v770
        %v779 = vadd.f32 %v751, %v766
        %v780 = vadd.f32 %v752, %v770
        %v781 = vadd.f32 %v753, %v766
        %v782 = vadd.f32 %v754, %v770
        %v783 = vadd.f32 %v755, %v766
        %v784 = vadd.f32 %v756, %v770
        %v785 = vadd.f32 %v757, %v766
        %v786 = vadd.f32 %v758, %v770
        %v787 = vadd.f32 %v759, %v766
        %v788 = vadd.f32 %v760, %v770
        %789 = vst [vmem:[%s220] sm:$0xff] %v773
        %790 = vst.msk [vmem:[%s220 + $0x8] sm:$0xff] %vm587, %v774
        %791 = vst [vmem:[%s220 + $0x10] sm:$0xff] %v775
        %792 = vst.msk [vmem:[%s220 + $0x18] sm:$0xff] %vm587, %v776
        %793 = vst [vmem:[%s220 + $0x20] sm:$0xff] %v777
        %794 = vst.msk [vmem:[%s220 + $0x28] sm:$0xff] %vm587, %v778
        %795 = vst [vmem:[%s220 + $0x30] sm:$0xff] %v779
        %796 = vst.msk [vmem:[%s220 + $0x38] sm:$0xff] %vm587, %v780
        %797 = vst [vmem:[%s220 + $0x40] sm:$0xff] %v781
        %798 = vst.msk [vmem:[%s220 + $0x48] sm:$0xff] %vm587, %v782
        %799 = vst [vmem:[%s220 + $0x50] sm:$0xff] %v783
        %800 = vst.msk [vmem:[%s220 + $0x58] sm:$0xff] %vm587, %v784
        %801 = vst [vmem:[%s220 + $0x60] sm:$0xff] %v785
        %802 = vst.msk [vmem:[%s220 + $0x68] sm:$0xff] %vm587, %v786
        %803 = vst [vmem:[%s220 + $0x70] sm:$0xff] %v787
        %804 = vst.msk [vmem:[%s220 + $0x78] sm:$0xff] %vm587, %v788
        %s805 = sand.u32 %s137, 1
        %s806 = scalar_lea.sflag [#allocation3], %s805
        %s807 = sand.u32 %s137, 1
        %s808 = smul.addr %s807, 128
        %s809 = scalar_lea.vmem [#allocation2], %s808
        // Predicated region
        $region41: #{patch_merging_forward.1} parent=39 // pred_check
          %p810 = pneg %p147
        $region42: #{patch_merging_forward.1} parent=39 // pred_check_branch
          %812 = sbr.rel (%p810) target = $region44
        $region43: #{patch_merging_forward.1} parent=39 // pred_region
          %s813 = smul.u32 8, %s19
          %s815 = ssub.s32 2048, 2048
          %816 = vsyncadd %s806, %s815
          %s817 = smul.addr %s813, 2
          %s818 = smul.addr %s817, 128
          %s819 = scalar_lea.hbm %s5, %s818
          %s820 = sshll.u32 %s809, 4
          %s821 = int_to_ptr.vmem [resolvable:$true] %s820
          %826 = dma.vmem_to_hbm [thread:$0]  %s821, 2048, %s819, %s806, 256, 256, 16
        $region44: #{patch_merging_forward.1} parent=39 // pred_fallthru
          _
      $region40: #{patch_merging_forward.1} parent=5 // pred_fallthru
        _
      %p827 = scmp.le.s32.totalorder 2, %s14
      // Predicated region
      $region45: #{patch_merging_forward.1} parent=5 // pred_check
        %p828 = pneg %p827
      $region46: #{patch_merging_forward.1} parent=5 // pred_check_branch
        %830 = sbr.rel (%p828) target = $region48
      $region47: #{patch_merging_forward.1} parent=5 // pred_region
        %s831 = ssub.s32 %s14, 2
        // Predicated region
        $region49: #{patch_merging_forward.1} parent=47 // pred_check
          %p832 = pneg %p153
        $region50: #{patch_merging_forward.1} parent=47 // pred_check_branch
          %834 = sbr.rel (%p832) target = $region52
        $region51: #{patch_merging_forward.1} parent=47 // pred_region
          %s835 = sand.u32 %s138, 1
          %s836 = scalar_lea.sflag [#allocation3], %s835
          %s837 = sand.u32 %s138, 1
          %s838 = smul.addr %s837, 128
          %s839 = scalar_lea.vmem [#allocation2], %s838
          %840 = dma.done %s836, 2048
        $region52: #{patch_merging_forward.1} parent=47 // pred_fallthru
          _
      $region48: #{patch_merging_forward.1} parent=5 // pred_fallthru
        _
    $region6: #{patch_merging_forward.1} parent=1 // loop_footer
      %s18 = sadd.s32 1, %s14
    $region7: #{patch_merging_forward.1} parent=1 // loop_footer_branch
      %13 = sbr.rel target = $region3
    $region8: #{patch_merging_forward.1} parent=1 // loop_exit
      _
    %841 = vsyncpa [#allocation3], 1
    %s842 = scalar_lea.sflag [#allocation3], 1
    %843 = vsyncpa %s842, 1

</llo_original>
